<compile_context>
chip_gen: v7x
topology: tpu7x:2x2x1
jax: 0.10.0
libtpu: 0.0.40
codegen_flags: <defaults>
</compile_context>

<pallas_src>
import jax
import jax.numpy as jnp
from jax import lax
from jax.experimental import pallas as pl
from jax.experimental.pallas import tpu as pltpu


_VMEM_LIMIT = 48 * 1024 * 1024    # scoped-VMEM limit requested (< v7x 64 MiB/TC)
_VMEM_BUDGET = 40 * 1024 * 1024   # working-set budget the tile is sized against


def _linear_kernel(x_ref, w_ref, b_ref, o_ref):
    # x_ref: (TM, Kf)   w_ref: (Nf, Kf)   b_ref: (1, Nf)   o_ref: (TM, Nf)
    # Contract on the last axis of both operands (MXU does trans_b for free).
    acc = lax.dot_general(
        x_ref[...], w_ref[...],
        dimension_numbers=(((1,), (1,)), ((), ())),
        preferred_element_type=jnp.float32)
    acc = acc + b_ref[...].astype(jnp.float32)   # (1, Nf) broadcast over rows
    o_ref[...] = acc.astype(o_ref.dtype)


def _pick_fold(k, n, max_fold=8):
    """Fold F logical rows per physical row so K*F and N*F are lane-dense.

    First reach 128-lane density for both input and output widths, then keep
    doubling (while the folded block-diagonal weight stays tiny) until both
    are multiples of 256 so the 256-deep MXUs on v6e/v7x run full."""
    f = 1
    while f < max_fold and ((k * f) % 128 or (n * f) % 128):
        f *= 2
    if (k * f) % 128 or (n * f) % 128:
        return 1                                    # folding can't reach density
    while (f < max_fold and ((k * f) % 256 or (n * f) % 256)
           and (2 * k * f) * (2 * n * f) * 4 <= (2 << 20)):
        f *= 2
    return f


def _pick_tile(mf, kf, nf, itemsize, max_row_tile):
    """Row tile: as large as the VMEM budget allows (fewer grid steps => less
    fixed per-step pipeline overhead on a purely HBM-bound kernel), capped at
    max_row_tile, and split into an even >=2-block grid when mf is large so
    both TensorCores of a megacore chip can run the 'parallel' axis."""
    per_row = 2 * (kf + nf) * itemsize              # double-buffered in + out
    fixed = 2 * (kf * nf + nf) * itemsize           # weight + bias buffers
    cap = max(8, int((_VMEM_BUDGET - fixed) // per_row) // 8 * 8)
    cap = min(cap, max_row_tile)
    if mf <= min(1024, cap):                        # small: one block is cheapest
        return mf
    nblocks = 2 * pl.cdiv(mf, 2 * cap)              # even, >= 2
    tile = min(cap, ((pl.cdiv(mf, nblocks) + 7) // 8) * 8)
    return tile


def _fold_params(weight, bias, fold):
    """Block-diagonal weight (F*N, F*K) and tiled bias (1, F*N). Exact."""
    if fold == 1:
        return weight, bias.reshape(1, -1)
    w_bd = jnp.kron(jnp.eye(fold, dtype=weight.dtype), weight)
    b_f = jnp.tile(bias, fold).reshape(1, -1)
    return w_bd, b_f


def _linear_2d(x2d, w_f, b_f, fold, max_row_tile):
    """y2d = x2d @ weight.T + bias for 2-D x2d with row count divisible by fold."""
    m, _ = x2d.shape
    nf, kf = w_f.shape
    n = nf // fold
    mf = m // fold
    x_f = x2d.reshape(mf, kf)                       # row-major, free reshape

    itemsize = jnp.dtype(x2d.dtype).itemsize
    tile = _pick_tile(mf, kf, nf, itemsize, max_row_tile)
    grid = (pl.cdiv(mf, tile),)                     # ragged last block is masked

    cost = pl.CostEstimate(
        flops=2 * mf * kf * nf,
        transcendentals=0,
        bytes_accessed=itemsize * (mf * kf + mf * nf + kf * nf + nf))

    out = pl.pallas_call(
        _linear_kernel,
        out_shape=jax.ShapeDtypeStruct((mf, nf), x2d.dtype),
        grid_spec=pltpu.PrefetchScalarGridSpec(
            num_scalar_prefetch=0,
            grid=grid,
            in_specs=[
                pl.BlockSpec((tile, kf), lambda i: (i, 0)),
                pl.BlockSpec((nf, kf), lambda i: (0, 0)),
                pl.BlockSpec((1, nf), lambda i: (0, 0)),
            ],
            out_specs=pl.BlockSpec((tile, nf), lambda i: (i, 0)),
        ),
        compiler_params=pltpu.CompilerParams(
            dimension_semantics=("parallel",),      # megacore-shardable
            vmem_limit_bytes=_VMEM_LIMIT),
        cost_estimate=cost,
    )(x_f, w_f, b_f)

    # (mf, fold*N) row-major is exactly (m, N) row-major -> free reshape back.
    return out.reshape(m, n)


def linear_embedding(x, weight, bias, *, max_row_tile=4096, max_fold=8):
    """y = x @ weight.T + bias, matching torch.nn.Linear."""
    in_size = x.shape[-1]
    embed_size = weight.shape[0]
    lead = x.shape[:-1]

    x2d = x.reshape(-1, in_size)                    # (M, K), contiguous
    m = x2d.shape[0]

    fold = _pick_fold(in_size, embed_size, max_fold)
    if fold > 1 and m >= fold:
        m_main = (m // fold) * fold
        w_f, b_f = _fold_params(weight, bias, fold)
        y_main = _linear_2d(x2d[:m_main], w_f, b_f, fold, max_row_tile)
        if m_main < m:
            # <= fold-1 leftover rows: tiny unfolded call, so the bulk of the
            # rows keeps lane-dense loads/stores (no whole-array F=1 cliff).
            w1, b1 = _fold_params(weight, bias, 1)
            y_rem = _linear_2d(x2d[m_main:], w1, b1, 1, max_row_tile)
            y2d = jnp.concatenate([y_main, y_rem], axis=0)
        else:
            y2d = y_main
    else:
        w1, b1 = _fold_params(weight, bias, 1)
        y2d = _linear_2d(x2d, w1, b1, 1, max_row_tile)

    return y2d.reshape(*lead, embed_size)


def make_linear_embedding(weight, bias, *, max_row_tile=4096, max_fold=8):
    """Hoists the (tiny) kron/tile weight prep out of the per-call path and
    returns a jitted apply(x)."""
    in_size = weight.shape[1]
    embed_size = weight.shape[0]
    fold = _pick_fold(in_size, embed_size, max_fold)
    w_f, b_f = _fold_params(weight, bias, fold)
    w1, b1 = _fold_params(weight, bias, 1)

    @jax.jit
    def apply(x):
        lead = x.shape[:-1]
        x2d = x.reshape(-1, in_size)
        m = x2d.shape[0]
        if fold > 1 and m >= fold:
            m_main = (m // fold) * fold
            y_main = _linear_2d(x2d[:m_main], w_f, b_f, fold, max_row_tile)
            if m_main < m:
                y_rem = _linear_2d(x2d[m_main:], w1, b1, 1, max_row_tile)
                y2d = jnp.concatenate([y_main, y_rem], axis=0)
            else:
                y2d = y_main
        else:
            y2d = _linear_2d(x2d, w1, b1, 1, max_row_tile)
        return y2d.reshape(*lead, embed_size)

    return apply


if __name__ == "__main__":
    # Module config: LinearEmbedding(input_size=32, embed_size=64)
    input_size = 32
    embed_size = 64
    batch, seq = 2, 8

    key = jax.random.PRNGKey(0)
    kx, kw, kb, kx2 = jax.random.split(key, 4)

    # Deterministic parameter init (shapes match nn.Linear(input_size, embed_size)).
    bound = 1.0 / (input_size ** 0.5)
    weight = jax.random.uniform(kw, (embed_size, input_size),
                                minval=-bound, maxval=bound, dtype=jnp.float32)
    bias = jax.random.uniform(kb, (embed_size,),
                              minval=-bound, maxval=bound, dtype=jnp.float32)

    x = jax.random.normal(kx, (batch, seq, input_size), dtype=jnp.float32)

    # Direct functional call.
    y = jax.block_until_ready(linear_embedding(x, weight, bias))
    y_ref = x @ weight.T + bias
    assert y.shape == (batch, seq, embed_size), y.shape
    assert jnp.allclose(y, y_ref, atol=1e-5, rtol=1e-5)

    # Factory path: folded params precomputed once, jitted apply.
    apply = make_linear_embedding(weight, bias)
    y2 = jax.block_until_ready(apply(x))
    assert jnp.allclose(y2, y_ref, atol=1e-5, rtol=1e-5)

    # Row count not divisible by the fold -> folded main body + tiny remainder.
    x_odd = jax.random.normal(kx2, (3, 7, input_size), dtype=jnp.float32)
    y_odd = jax.block_until_ready(linear_embedding(x_odd, weight, bias))
    assert jnp.allclose(y_odd, x_odd @ weight.T + bias, atol=1e-5, rtol=1e-5)

    print("KERNEL_OK")
</pallas_src>

<mosaic_0001>
module attributes {stable_mosaic.version = 11 : i64} {
  func.func @_linear_kernel(%arg0: i32, %arg1: memref<2x256xf32, #tpu.memory_space<vmem>>, %arg2: memref<512x256xf32, #tpu.memory_space<vmem>>, %arg3: memref<1x512xf32, #tpu.memory_space<vmem>>, %arg4: memref<2x512xf32, #tpu.memory_space<vmem>>) attributes {dimension_semantics = [#tpu.dimension_semantics<parallel>], iteration_bounds = array<i64: 1>, scalar_prefetch = 0 : i64, scratch_operands = 0 : i64, tpu.core_type = #tpu.core_type<tc>, window_params = [{transform_indices = @transform_0, window_bounds = array<i64: 2, 256>}, {pipeline_mode = #tpu.pipeline_mode<synchronous>, transform_indices = @transform_1, window_bounds = array<i64: 512, 256>}, {pipeline_mode = #tpu.pipeline_mode<synchronous>, transform_indices = @transform_2, window_bounds = array<i64: 1, 512>}, {transform_indices = @transform_3, window_bounds = array<i64: 2, 512>}]} {
    %c0 = arith.constant 0 : index
    %c0_0 = arith.constant 0 : index
    %0 = vector.load %arg1[%c0, %c0_0] : memref<2x256xf32, #tpu.memory_space<vmem>>, vector<2x256xf32>
    %c0_1 = arith.constant 0 : index
    %c0_2 = arith.constant 0 : index
    %1 = vector.load %arg2[%c0_1, %c0_2] : memref<512x256xf32, #tpu.memory_space<vmem>>, vector<512x256xf32>
    %cst = arith.constant dense<0.000000e+00> : vector<2x512xf32>
    %2 = tpu.matmul %0, %1, %cst {dimension_numbers = #tpu.dot_dimension_numbers<[1], [1], [0], [0], [0, 0, 1, 0], [], []>} : vector<2x256xf32>, vector<512x256xf32>, vector<2x512xf32> -> vector<2x512xf32>
    %c0_3 = arith.constant 0 : index
    %c0_4 = arith.constant 0 : index
    %3 = vector.load %arg3[%c0_3, %c0_4] : memref<1x512xf32, #tpu.memory_space<vmem>>, vector<1x512xf32>
    %4 = vector.broadcast %3 : vector<1x512xf32> to vector<2x512xf32>
    %5 = arith.addf %2, %4 : vector<2x512xf32>
    %c0_5 = arith.constant 0 : index
    %c0_6 = arith.constant 0 : index
    %6 = vector.load %arg4[%c0_5, %c0_6] : memref<2x512xf32, #tpu.memory_space<vmem>>, vector<2x512xf32>
    tpu.vector_store %arg4[%c0_5, %c0_6], %5 {strides = array<i32>} : memref<2x512xf32, #tpu.memory_space<vmem>>, vector<2x512xf32>,
    return
  }
  func.func @transform_0(%arg0: i32) -> (i32, i32) {
    %c0_i32 = arith.constant 0 : i32
    %c0_i32_0 = arith.constant 0 : i32
    return %arg0, %c0_i32 : i32, i32
  }
  func.func @transform_1(%arg0: i32) -> (i32, i32) {
    %c0_i32 = arith.constant 0 : i32
    %c0_i32_0 = arith.constant 0 : i32
    %c0_i32_1 = arith.constant 0 : i32
    return %c0_i32, %c0_i32_0 : i32, i32
  }
  func.func @transform_2(%arg0: i32) -> (i32, i32) {
    %c0_i32 = arith.constant 0 : i32
    %c0_i32_0 = arith.constant 0 : i32
    %c0_i32_1 = arith.constant 0 : i32
    return %c0_i32, %c0_i32_0 : i32, i32
  }
  func.func @transform_3(%arg0: i32) -> (i32, i32) {
    %c0_i32 = arith.constant 0 : i32
    %c0_i32_0 = arith.constant 0 : i32
    return %arg0, %c0_i32 : i32, i32
  }
}

</mosaic_0001>

<llo_original>
// kernel: tpu_custom_call.1
$region0: #{tpu_custom_call.1}
  #allocation0 [shape = 'u32[]', space=smem, size = 0x4, offset = 0x4, fixed_abs, tag = 'smem constant byte address 0x4 - core index']
  #allocation1 [shape = 'u32[144,128]{1,0:T(1,128)}', space=vmem, size = 0x12000, scoped, tag = 'internal scratch']
  %s0 = inlined_call_operand.hbm [shape: f32[2,256], index: 0, kind: input, shape index: {}]
  %s1 = inlined_call_operand.hbm [shape: f32[512,256], index: 1, kind: input, shape index: {}]
  %s2 = inlined_call_operand.vmem [shape: f32[1,512], index: 2, kind: input, shape index: {}]
  %s3 = inlined_call_operand.hbm [shape: f32[2,512], index: 3, kind: output, shape index: {}]
  %s4 = sld [smem:[#allocation0]]
  $region30: #{tpu_custom_call.1} parent=0
    _
  %s6 = ssub.s32 1, %s4
  %s7 = scalar_select 0, %s6, %s4
  $region1: #{tpu_custom_call.1} parent=0
    #allocation2 [shape = 'u8[2048]{0}', space=vmem, size = 0x800, scoped, tag = 'input window, operand 0, single buffered']
    #allocation3 [shape = 's32[1]{0}', space=sflag, size = 0x4, scoped, tag = 'scoped memory for tpu_custom_call.1']
    #allocation4 [shape = 's32[1]{0}', space=sflag, size = 0x4, scoped, tag = 'scoped memory for tpu_custom_call.1']
    #allocation5 [shape = 'u8[524288]{0}', space=vmem, size = 0x80000, scoped, tag = 'input window, operand 1, single buffered']
    #allocation6 [shape = 's32[1]{0}', space=sflag, size = 0x4, scoped, tag = 'scoped memory for tpu_custom_call.1']
    #allocation7 [shape = 'u8[4096]{0}', space=vmem, size = 0x1000, scoped, tag = 'output window, operand 0, single buffered']
    %8 = vsyncpa [#allocation3], 0
    %9 = vsyncpa [#allocation6], 0
    %10 = vsyncpa [#allocation4], 0
    // Predicated region
    $region2: #{tpu_custom_call.1} parent=1 // pred_check
      _
    $region3: #{tpu_custom_call.1} parent=1 // pred_check_branch
      %12 = sbr.rel (0) target = $region5
    $region4: #{tpu_custom_call.1} parent=1 // pred_region
      %s14 = ssub.s32 64, 64
      %15 = vsyncadd [#allocation3], %s14
      %s17 = sshll.u32 [#allocation2], 4
      %s18 = int_to_ptr.vmem [resolvable:$true] %s17
      %20 = dma.hbm_to_vmem [thread:$0]  %s0, 64, %s18, [#allocation3]
    $region5: #{tpu_custom_call.1} parent=1 // pred_fallthru
      _
    // Predicated region
    $region6: #{tpu_custom_call.1} parent=1 // pred_check
      _
    $region7: #{tpu_custom_call.1} parent=1 // pred_check_branch
      %22 = sbr.rel (0) target = $region9
    $region8: #{tpu_custom_call.1} parent=1 // pred_region
      %s24 = ssub.s32 16384, 16384
      %25 = vsyncadd [#allocation6], %s24
      %s26 = sshll.u32 [#allocation5], 4
      %s27 = int_to_ptr.vmem [resolvable:$true] %s26
      %32 = dma.hbm_to_vmem [thread:$0]  %s1, 16384, %s27, [#allocation6], 256, 256, 16
    $region9: #{tpu_custom_call.1} parent=1 // pred_fallthru
      _
    // Predicated region
    $region10: #{tpu_custom_call.1} parent=1 // pred_check
      _
    $region11: #{tpu_custom_call.1} parent=1 // pred_check_branch
      %34 = sbr.rel (0) target = $region13
    $region12: #{tpu_custom_call.1} parent=1 // pred_region
      _
    $region13: #{tpu_custom_call.1} parent=1 // pred_fallthru
      _
    // Predicated region
    $region14: #{tpu_custom_call.1} parent=1 // pred_check
      _
    $region15: #{tpu_custom_call.1} parent=1 // pred_check_branch
      %36 = sbr.rel (0) target = $region17
    $region16: #{tpu_custom_call.1} parent=1 // pred_region
      %37 = dma.done [#allocation3], 64
    $region17: #{tpu_custom_call.1} parent=1 // pred_fallthru
      _
    // Predicated region
    $region18: #{tpu_custom_call.1} parent=1 // pred_check
      _
    $region19: #{tpu_custom_call.1} parent=1 // pred_check_branch
      %39 = sbr.rel (0) target = $region21
    $region20: #{tpu_custom_call.1} parent=1 // pred_region
      %40 = dma.done [#allocation6], 16384
    $region21: #{tpu_custom_call.1} parent=1 // pred_fallthru
      _
    %v41 = vld [vmem:[#allocation2] sm:$0xf]
    %v42 = vld [vmem:[#allocation5] sm:$0xff]
    %v43 = vld [vmem:[#allocation5 + $0x8] sm:$0xff]
    %v44 = vld [vmem:[#allocation5 + $0x10] sm:$0xff]
    %v45 = vld [vmem:[#allocation5 + $0x18] sm:$0xff]
    %v46 = vld [vmem:[#allocation5 + $0x20] sm:$0xff]
    %v47 = vld [vmem:[#allocation5 + $0x28] sm:$0xff]
    %v48 = vld [vmem:[#allocation5 + $0x30] sm:$0xff]
    %v49 = vld [vmem:[#allocation5 + $0x38] sm:$0xff]
    %v50 = vld [vmem:[#allocation5 + $0x40] sm:$0xff]
    %v51 = vld [vmem:[#allocation5 + $0x48] sm:$0xff]
    %v52 = vld [vmem:[#allocation5 + $0x50] sm:$0xff]
    %v53 = vld [vmem:[#allocation5 + $0x58] sm:$0xff]
    %v54 = vld [vmem:[#allocation5 + $0x60] sm:$0xff]
    %v55 = vld [vmem:[#allocation5 + $0x68] sm:$0xff]
    %v56 = vld [vmem:[#allocation5 + $0x70] sm:$0xff]
    %v57 = vld [vmem:[#allocation5 + $0x78] sm:$0xff]
    %v58 = vld [vmem:[#allocation5 + $0x80] sm:$0xff]
    %v59 = vld [vmem:[#allocation5 + $0x88] sm:$0xff]
    %v60 = vld [vmem:[#allocation5 + $0x90] sm:$0xff]
    %v61 = vld [vmem:[#allocation5 + $0x98] sm:$0xff]
    %v62 = vld [vmem:[#allocation5 + $0xa0] sm:$0xff]
    %v63 = vld [vmem:[#allocation5 + $0xa8] sm:$0xff]
    %v64 = vld [vmem:[#allocation5 + $0xb0] sm:$0xff]
    %v65 = vld [vmem:[#allocation5 + $0xb8] sm:$0xff]
    %v66 = vld [vmem:[#allocation5 + $0xc0] sm:$0xff]
    %v67 = vld [vmem:[#allocation5 + $0xc8] sm:$0xff]
    %v68 = vld [vmem:[#allocation5 + $0xd0] sm:$0xff]
    %v69 = vld [vmem:[#allocation5 + $0xd8] sm:$0xff]
    %v70 = vld [vmem:[#allocation5 + $0xe0] sm:$0xff]
    %v71 = vld [vmem:[#allocation5 + $0xe8] sm:$0xff]
    %v72 = vld [vmem:[#allocation5 + $0xf0] sm:$0xff]
    %v73 = vld [vmem:[#allocation5 + $0xf8] sm:$0xff]
    %v74 = vld [vmem:[#allocation5 + $0x100] sm:$0xff]
    %v75 = vld [vmem:[#allocation5 + $0x108] sm:$0xff]
    %v76 = vld [vmem:[#allocation5 + $0x110] sm:$0xff]
    %v77 = vld [vmem:[#allocation5 + $0x118] sm:$0xff]
    %v78 = vld [vmem:[#allocation5 + $0x120] sm:$0xff]
    %v79 = vld [vmem:[#allocation5 + $0x128] sm:$0xff]
    %v80 = vld [vmem:[#allocation5 + $0x130] sm:$0xff]
    %v81 = vld [vmem:[#allocation5 + $0x138] sm:$0xff]
    %v82 = vld [vmem:[#allocation5 + $0x140] sm:$0xff]
    %v83 = vld [vmem:[#allocation5 + $0x148] sm:$0xff]
    %v84 = vld [vmem:[#allocation5 + $0x150] sm:$0xff]
    %v85 = vld [vmem:[#allocation5 + $0x158] sm:$0xff]
    %v86 = vld [vmem:[#allocation5 + $0x160] sm:$0xff]
    %v87 = vld [vmem:[#allocation5 + $0x168] sm:$0xff]
    %v88 = vld [vmem:[#allocation5 + $0x170] sm:$0xff]
    %v89 = vld [vmem:[#allocation5 + $0x178] sm:$0xff]
    %v90 = vld [vmem:[#allocation5 + $0x180] sm:$0xff]
    %v91 = vld [vmem:[#allocation5 + $0x188] sm:$0xff]
    %v92 = vld [vmem:[#allocation5 + $0x190] sm:$0xff]
    %v93 = vld [vmem:[#allocation5 + $0x198] sm:$0xff]
    %v94 = vld [vmem:[#allocation5 + $0x1a0] sm:$0xff]
    %v95 = vld [vmem:[#allocation5 + $0x1a8] sm:$0xff]
    %v96 = vld [vmem:[#allocation5 + $0x1b0] sm:$0xff]
    %v97 = vld [vmem:[#allocation5 + $0x1b8] sm:$0xff]
    %v98 = vld [vmem:[#allocation5 + $0x1c0] sm:$0xff]
    %v99 = vld [vmem:[#allocation5 + $0x1c8] sm:$0xff]
    %v100 = vld [vmem:[#allocation5 + $0x1d0] sm:$0xff]
    %v101 = vld [vmem:[#allocation5 + $0x1d8] sm:$0xff]
    %v102 = vld [vmem:[#allocation5 + $0x1e0] sm:$0xff]
    %v103 = vld [vmem:[#allocation5 + $0x1e8] sm:$0xff]
    %v104 = vld [vmem:[#allocation5 + $0x1f0] sm:$0xff]
    %v105 = vld [vmem:[#allocation5 + $0x1f8] sm:$0xff]
    %v106 = vld [vmem:[#allocation5 + $0x200] sm:$0xff]
    %v107 = vld [vmem:[#allocation5 + $0x208] sm:$0xff]
    %v108 = vld [vmem:[#allocation5 + $0x210] sm:$0xff]
    %v109 = vld [vmem:[#allocation5 + $0x218] sm:$0xff]
    %v110 = vld [vmem:[#allocation5 + $0x220] sm:$0xff]
    %v111 = vld [vmem:[#allocation5 + $0x228] sm:$0xff]
    %v112 = vld [vmem:[#allocation5 + $0x230] sm:$0xff]
    %v113 = vld [vmem:[#allocation5 + $0x238] sm:$0xff]
    %v114 = vld [vmem:[#allocation5 + $0x240] sm:$0xff]
    %v115 = vld [vmem:[#allocation5 + $0x248] sm:$0xff]
    %v116 = vld [vmem:[#allocation5 + $0x250] sm:$0xff]
    %v117 = vld [vmem:[#allocation5 + $0x258] sm:$0xff]
    %v118 = vld [vmem:[#allocation5 + $0x260] sm:$0xff]
    %v119 = vld [vmem:[#allocation5 + $0x268] sm:$0xff]
    %v120 = vld [vmem:[#allocation5 + $0x270] sm:$0xff]
    %v121 = vld [vmem:[#allocation5 + $0x278] sm:$0xff]
    %v122 = vld [vmem:[#allocation5 + $0x280] sm:$0xff]
    %v123 = vld [vmem:[#allocation5 + $0x288] sm:$0xff]
    %v124 = vld [vmem:[#allocation5 + $0x290] sm:$0xff]
    %v125 = vld [vmem:[#allocation5 + $0x298] sm:$0xff]
    %v126 = vld [vmem:[#allocation5 + $0x2a0] sm:$0xff]
    %v127 = vld [vmem:[#allocation5 + $0x2a8] sm:$0xff]
    %v128 = vld [vmem:[#allocation5 + $0x2b0] sm:$0xff]
    %v129 = vld [vmem:[#allocation5 + $0x2b8] sm:$0xff]
    %v130 = vld [vmem:[#allocation5 + $0x2c0] sm:$0xff]
    %v131 = vld [vmem:[#allocation5 + $0x2c8] sm:$0xff]
    %v132 = vld [vmem:[#allocation5 + $0x2d0] sm:$0xff]
    %v133 = vld [vmem:[#allocation5 + $0x2d8] sm:$0xff]
    %v134 = vld [vmem:[#allocation5 + $0x2e0] sm:$0xff]
    %v135 = vld [vmem:[#allocation5 + $0x2e8] sm:$0xff]
    %v136 = vld [vmem:[#allocation5 + $0x2f0] sm:$0xff]
    %v137 = vld [vmem:[#allocation5 + $0x2f8] sm:$0xff]
    %v138 = vld [vmem:[#allocation5 + $0x300] sm:$0xff]
    %v139 = vld [vmem:[#allocation5 + $0x308] sm:$0xff]
    %v140 = vld [vmem:[#allocation5 + $0x310] sm:$0xff]
    %v141 = vld [vmem:[#allocation5 + $0x318] sm:$0xff]
    %v142 = vld [vmem:[#allocation5 + $0x320] sm:$0xff]
    %v143 = vld [vmem:[#allocation5 + $0x328] sm:$0xff]
    %v144 = vld [vmem:[#allocation5 + $0x330] sm:$0xff]
    %v145 = vld [vmem:[#allocation5 + $0x338] sm:$0xff]
    %v146 = vld [vmem:[#allocation5 + $0x340] sm:$0xff]
    %v147 = vld [vmem:[#allocation5 + $0x348] sm:$0xff]
    %v148 = vld [vmem:[#allocation5 + $0x350] sm:$0xff]
    %v149 = vld [vmem:[#allocation5 + $0x358] sm:$0xff]
    %v150 = vld [vmem:[#allocation5 + $0x360] sm:$0xff]
    %v151 = vld [vmem:[#allocation5 + $0x368] sm:$0xff]
    %v152 = vld [vmem:[#allocation5 + $0x370] sm:$0xff]
    %v153 = vld [vmem:[#allocation5 + $0x378] sm:$0xff]
    %v154 = vld [vmem:[#allocation5 + $0x380] sm:$0xff]
    %v155 = vld [vmem:[#allocation5 + $0x388] sm:$0xff]
    %v156 = vld [vmem:[#allocation5 + $0x390] sm:$0xff]
    %v157 = vld [vmem:[#allocation5 + $0x398] sm:$0xff]
    %v158 = vld [vmem:[#allocation5 + $0x3a0] sm:$0xff]
    %v159 = vld [vmem:[#allocation5 + $0x3a8] sm:$0xff]
    %v160 = vld [vmem:[#allocation5 + $0x3b0] sm:$0xff]
    %v161 = vld [vmem:[#allocation5 + $0x3b8] sm:$0xff]
    %v162 = vld [vmem:[#allocation5 + $0x3c0] sm:$0xff]
    %v163 = vld [vmem:[#allocation5 + $0x3c8] sm:$0xff]
    %v164 = vld [vmem:[#allocation5 + $0x3d0] sm:$0xff]
    %v165 = vld [vmem:[#allocation5 + $0x3d8] sm:$0xff]
    %v166 = vld [vmem:[#allocation5 + $0x3e0] sm:$0xff]
    %v167 = vld [vmem:[#allocation5 + $0x3e8] sm:$0xff]
    %v168 = vld [vmem:[#allocation5 + $0x3f0] sm:$0xff]
    %v169 = vld [vmem:[#allocation5 + $0x3f8] sm:$0xff]
    %v170 = vld [vmem:[%s2] sm:$0xf]
    %v172 = vlaneseq
    %v173 = vshrl.u32 %v172, 7
    %v174 = vsub.s32 0, %v173
    %v175 = vrot.slane %v170, %v174
    %v176 = vlaneseq
    %v177 = vshrl.u32 %v176, 7
    %v178 = vsub.s32 1, %v177
    %v179 = vrot.slane %v170, %v178
    %v180 = vlaneseq
    %v181 = vshrl.u32 %v180, 7
    %v182 = vsub.s32 2, %v181
    %v183 = vrot.slane %v170, %v182
    %v184 = vlaneseq
    %v185 = vshrl.u32 %v184, 7
    %v186 = vsub.s32 3, %v185
    %v187 = vrot.slane %v170, %v186
    %v194 = vunpack.c.l.s4 1983009808
    %v195 = vunpack.c.0.s8 %v194
    %v196 = vlaneseq
    %v197 = vshrl.u32 %v196, 7
    %v198 = vsub.s32 %v195, %v197
    %v199 = vrot.slane %v41, %v198
    %v200 = vcombine.high %v199, %v199
    %203 = vmatprep.subr.mxu0 %v43
    %204 = vmatpush1.xpose.msra.mxu0 %v42
    %205 = vmatprep.subr.mxu0 %v45
    %206 = vmatpush1.xpose.msra.mxu0 %v44
    %207 = vmatprep.subr.mxu0 %v47
    %208 = vmatpush1.xpose.msra.mxu0 %v46
    %209 = vmatprep.subr.mxu0 %v49
    %210 = vmatpush1.xpose.msra.mxu0 %v48
    %211 = vmatprep.subr.mxu0 %v51
    %212 = vmatpush1.xpose.msra.mxu0 %v50
    %213 = vmatprep.subr.mxu0 %v53
    %214 = vmatpush1.xpose.msra.mxu0 %v52
    %215 = vmatprep.subr.mxu0 %v55
    %216 = vmatpush1.xpose.msra.mxu0 %v54
    %217 = vmatprep.subr.mxu0 %v57
    %218 = vmatpush1.xpose.msra.mxu0 %v56
    %219 = vmatprep.subr.mxu0 %v59
    %220 = vmatpush1.xpose.msra.mxu0 %v58
    %221 = vmatprep.subr.mxu0 %v61
    %222 = vmatpush1.xpose.msra.mxu0 %v60
    %223 = vmatprep.subr.mxu0 %v63
    %224 = vmatpush1.xpose.msra.mxu0 %v62
    %225 = vmatprep.subr.mxu0 %v65
    %226 = vmatpush1.xpose.msra.mxu0 %v64
    %227 = vmatprep.subr.mxu0 %v67
    %228 = vmatpush1.xpose.msra.mxu0 %v66
    %229 = vmatprep.subr.mxu0 %v69
    %230 = vmatpush1.xpose.msra.mxu0 %v68
    %231 = vmatprep.subr.mxu0 %v71
    %232 = vmatpush1.xpose.msra.mxu0 %v70
    %233 = vmatprep.subr.mxu0 %v73
    %234 = vmatpush1.xpose.msra.mxu0 %v72
    %235 = vmatprep.subr.mxu0 %v75
    %236 = vmatpush1.xpose.msra.mxu0 %v74
    %237 = vmatprep.subr.mxu0 %v77
    %238 = vmatpush1.xpose.msra.mxu0 %v76
    %239 = vmatprep.subr.mxu0 %v79
    %240 = vmatpush1.xpose.msra.mxu0 %v78
    %241 = vmatprep.subr.mxu0 %v81
    %242 = vmatpush1.xpose.msra.mxu0 %v80
    %243 = vmatprep.subr.mxu0 %v83
    %244 = vmatpush1.xpose.msra.mxu0 %v82
    %245 = vmatprep.subr.mxu0 %v85
    %246 = vmatpush1.xpose.msra.mxu0 %v84
    %247 = vmatprep.subr.mxu0 %v87
    %248 = vmatpush1.xpose.msra.mxu0 %v86
    %249 = vmatprep.subr.mxu0 %v89
    %250 = vmatpush1.xpose.msra.mxu0 %v88
    %251 = vmatprep.subr.mxu0 %v91
    %252 = vmatpush1.xpose.msra.mxu0 %v90
    %253 = vmatprep.subr.mxu0 %v93
    %254 = vmatpush1.xpose.msra.mxu0 %v92
    %255 = vmatprep.subr.mxu0 %v95
    %256 = vmatpush1.xpose.msra.mxu0 %v94
    %257 = vmatprep.subr.mxu0 %v97
    %258 = vmatpush1.xpose.msra.mxu0 %v96
    %259 = vmatprep.subr.mxu0 %v99
    %260 = vmatpush1.xpose.msra.mxu0 %v98
    %261 = vmatprep.subr.mxu0 %v101
    %262 = vmatpush1.xpose.msra.mxu0 %v100
    %263 = vmatprep.subr.mxu0 %v103
    %264 = vmatpush1.xpose.msra.mxu0 %v102
    %265 = vmatprep.subr.mxu0 %v105
    %266 = vmatpush1.xpose.msra.mxu0 %v104
    %267 = vmatprep.mubr.f32.mxu0 %v200
    %268 = vmatmul.mubr.f32.gmra.mrb[0].mxu0 %v199
    %v269 = vpop.f32.mrb[0].mxu0
    %v270 = vadd.f32 %v175, %v269
    %v271 = vpop.f32.mrb[0].mxu0
    %v272 = vadd.f32 %v179, %v271
    %273 = vdwg.mxu0
    %274 = vmatprep.subr.mxu0 %v107
    %275 = vmatpush1.xpose.msra.mxu0 %v106
    %276 = vmatprep.subr.mxu0 %v109
    %277 = vmatpush1.xpose.msra.mxu0 %v108
    %278 = vmatprep.subr.mxu0 %v111
    %279 = vmatpush1.xpose.msra.mxu0 %v110
    %280 = vmatprep.subr.mxu0 %v113
    %281 = vmatpush1.xpose.msra.mxu0 %v112
    %282 = vmatprep.subr.mxu0 %v115
    %283 = vmatpush1.xpose.msra.mxu0 %v114
    %284 = vmatprep.subr.mxu0 %v117
    %285 = vmatpush1.xpose.msra.mxu0 %v116
    %286 = vmatprep.subr.mxu0 %v119
    %287 = vmatpush1.xpose.msra.mxu0 %v118
    %288 = vmatprep.subr.mxu0 %v121
    %289 = vmatpush1.xpose.msra.mxu0 %v120
    %290 = vmatprep.subr.mxu0 %v123
    %291 = vmatpush1.xpose.msra.mxu0 %v122
    %292 = vmatprep.subr.mxu0 %v125
    %293 = vmatpush1.xpose.msra.mxu0 %v124
    %294 = vmatprep.subr.mxu0 %v127
    %295 = vmatpush1.xpose.msra.mxu0 %v126
    %296 = vmatprep.subr.mxu0 %v129
    %297 = vmatpush1.xpose.msra.mxu0 %v128
    %298 = vmatprep.subr.mxu0 %v131
    %299 = vmatpush1.xpose.msra.mxu0 %v130
    %300 = vmatprep.subr.mxu0 %v133
    %301 = vmatpush1.xpose.msra.mxu0 %v132
    %302 = vmatprep.subr.mxu0 %v135
    %303 = vmatpush1.xpose.msra.mxu0 %v134
    %304 = vmatprep.subr.mxu0 %v137
    %305 = vmatpush1.xpose.msra.mxu0 %v136
    %306 = vmatprep.subr.mxu0 %v139
    %307 = vmatpush1.xpose.msra.mxu0 %v138
    %308 = vmatprep.subr.mxu0 %v141
    %309 = vmatpush1.xpose.msra.mxu0 %v140
    %310 = vmatprep.subr.mxu0 %v143
    %311 = vmatpush1.xpose.msra.mxu0 %v142
    %312 = vmatprep.subr.mxu0 %v145
    %313 = vmatpush1.xpose.msra.mxu0 %v144
    %314 = vmatprep.subr.mxu0 %v147
    %315 = vmatpush1.xpose.msra.mxu0 %v146
    %316 = vmatprep.subr.mxu0 %v149
    %317 = vmatpush1.xpose.msra.mxu0 %v148
    %318 = vmatprep.subr.mxu0 %v151
    %319 = vmatpush1.xpose.msra.mxu0 %v150
    %320 = vmatprep.subr.mxu0 %v153
    %321 = vmatpush1.xpose.msra.mxu0 %v152
    %322 = vmatprep.subr.mxu0 %v155
    %323 = vmatpush1.xpose.msra.mxu0 %v154
    %324 = vmatprep.subr.mxu0 %v157
    %325 = vmatpush1.xpose.msra.mxu0 %v156
    %326 = vmatprep.subr.mxu0 %v159
    %327 = vmatpush1.xpose.msra.mxu0 %v158
    %328 = vmatprep.subr.mxu0 %v161
    %329 = vmatpush1.xpose.msra.mxu0 %v160
    %330 = vmatprep.subr.mxu0 %v163
    %331 = vmatpush1.xpose.msra.mxu0 %v162
    %332 = vmatprep.subr.mxu0 %v165
    %333 = vmatpush1.xpose.msra.mxu0 %v164
    %334 = vmatprep.subr.mxu0 %v167
    %335 = vmatpush1.xpose.msra.mxu0 %v166
    %336 = vmatprep.subr.mxu0 %v169
    %337 = vmatpush1.xpose.msra.mxu0 %v168
    %338 = vmatprep.mubr.f32.mxu0 %v200
    %339 = vmatmul.mubr.f32.gmra.mrb[0].mxu0 %v199
    %v340 = vpop.f32.mrb[0].mxu0
    %v341 = vadd.f32 %v183, %v340
    %v342 = vpop.f32.mrb[0].mxu0
    %v343 = vadd.f32 %v187, %v342
    %344 = vdwg.mxu0
    %v349 = vcombine.low %v270, %v272
    %v350 = vcombine.low %v341, %v343
    %v352 = vunpack.c.l.s4 1983009808
    %v353 = vunpack.c.0.s8 %v352
    %v354 = vlaneseq
    %v355 = vshrl.u32 %v354, 7
    %v356 = vsub.s32 %v353, %v355
    %v357 = vrot.slane %v349, %v356
    %v359 = vunpack.c.l.s4 1983009808
    %v360 = vunpack.c.0.s8 %v359
    %v361 = vlaneseq
    %v362 = vshrl.u32 %v361, 7
    %v363 = vsub.s32 %v360, %v362
    %v364 = vrot.slane %v350, %v363
    %v365 = vcombine.low %v357, %v364
    %367 = vst [vmem:[#allocation7] sm:$0xff] %v365
    // Predicated region
    $region22: #{tpu_custom_call.1} parent=1 // pred_check
      _
    $region23: #{tpu_custom_call.1} parent=1 // pred_check_branch
      %369 = sbr.rel (0) target = $region25
    $region24: #{tpu_custom_call.1} parent=1 // pred_region
      %s371 = ssub.s32 128, 128
      %372 = vsyncadd [#allocation4], %s371
      %s374 = sshll.u32 [#allocation7], 4
      %s375 = int_to_ptr.vmem [resolvable:$true] %s374
      %377 = dma.vmem_to_hbm [thread:$0]  %s375, 128, %s3, [#allocation4]
    $region25: #{tpu_custom_call.1} parent=1 // pred_fallthru
      _
    // Predicated region
    $region26: #{tpu_custom_call.1} parent=1 // pred_check
      _
    $region27: #{tpu_custom_call.1} parent=1 // pred_check_branch
      %379 = sbr.rel (0) target = $region29
    $region28: #{tpu_custom_call.1} parent=1 // pred_region
      %380 = dma.done [#allocation4], 128
    $region29: #{tpu_custom_call.1} parent=1 // pred_fallthru
      _
    %381 = vsyncpa [#allocation3], 1
    %382 = vsyncpa [#allocation6], 1
    %383 = vsyncpa [#allocation4], 1

</llo_original>
